<compile_context>
chip_gen: v5e
topology: v5e:2x2
jax: 0.10.0
libtpu: 0.0.40
codegen_flags: <defaults>
</compile_context>

<pallas_src>
import functools

import jax
import jax.numpy as jnp
from jax.experimental import pallas as pl
from jax.experimental.pallas import tpu as pltpu


def _round_up(x, m):
    return (x + m - 1) // m * m


def _gelu_tanh(x):
    # gelu_pytorch_tanh (the Gemma activation), computed in f32.
    c = 0.7978845608028654  # sqrt(2/pi)
    return 0.5 * x * (1.0 + jnp.tanh(c * (x + 0.044715 * x * x * x)))


def _device_defaults():
    """Generation-aware defaults: (tm, ti, vmem_limit_bytes, tensorcores/chip)."""
    # Conservative fallback (safe on every generation).
    tm, ti, vmem_limit, cores = 512, 512, 48 << 20, 1
    kind = ""
    try:
        kind = jax.devices()[0].device_kind.lower()
    except Exception:
        pass
    vmem_cap = None
    try:
        vmem_cap = int(getattr(pltpu.get_tpu_info(), "vmem_capacity_bytes"))
    except Exception:
        pass

    if "v7" in kind:
        # v7x: 64 MiB VMEM/TC, ~3.2 TB/s HBM/TC, 2 TCs/chip. tm=512 is already
        # compute-bound; keep VMEM limit well under the 64 MiB ceiling.
        tm, ti, vmem_limit, cores = 512, 512, 52 << 20, 2
    elif "v6" in kind:
        # v6e: 128 MiB VMEM, needs ~650 FLOPs/byte -> tm=1024 to clear the knee.
        tm, ti, vmem_limit, cores = 1024, 1024, 96 << 20, 1
    elif "v5" in kind:
        # v5e: roofline knee ~240 FLOPs/byte; tm=512 gives margin.
        tm, ti, vmem_limit, cores = 512, 1024, 96 << 20, 1
    elif vmem_cap is not None and vmem_cap <= (64 << 20):
        tm, ti, vmem_limit, cores = 512, 512, 52 << 20, 2
    elif vmem_cap is not None and vmem_cap >= (128 << 20):
        tm, ti, vmem_limit, cores = 1024, 1024, 96 << 20, 1
    return tm, ti, vmem_limit, cores


def prepare_gemma3n_mlp_weights(gate_w, up_w, down_w, *, ti=None,
                                compute_dtype=jnp.bfloat16):
    """One-time weight packing (do this at weight-load time, NOT per forward).

    gate_w/up_w: [I, H]; down_w: [H, I] (PyTorch nn.Linear layout).
    Returns {"wgu_t": [H, 2*I_pad] packed [gate|up] per ti-block,
             "wd_t":  [I_pad, H],
             "ti":    intermediate tile size the packing was built for}.
    """
    I, H = gate_w.shape
    assert up_w.shape == (I, H) and down_w.shape == (H, I)
    if ti is None:
        _, ti, _, _ = _device_defaults()
    ti = min(ti, _round_up(I, 128))
    I_pad = _round_up(I, ti)
    n_i = I_pad // ti

    gate_p = jnp.asarray(gate_w, compute_dtype)
    up_p = jnp.asarray(up_w, compute_dtype)
    down_p = jnp.asarray(down_w, compute_dtype)
    if I_pad != I:
        # Zero-padding I is exact: gelu_tanh(0) * 0 contributes nothing.
        gate_p = jnp.pad(gate_p, ((0, I_pad - I), (0, 0)))
        up_p = jnp.pad(up_p, ((0, I_pad - I), (0, 0)))
        down_p = jnp.pad(down_p, ((0, 0), (0, I_pad - I)))

    # [H, 2*I_pad] laid out as [gate_tile_j | up_tile_j] for each ti block j.
    wgu_t = (jnp.concatenate(
        [gate_p.reshape(n_i, ti, H), up_p.reshape(n_i, ti, H)], axis=1)
        .reshape(2 * I_pad, H).T)
    wd_t = down_p.T                                  # [I_pad, H]

    wgu_t = jax.block_until_ready(wgu_t)
    wd_t = jax.block_until_ready(wd_t)
    return {"wgu_t": wgu_t, "wd_t": wd_t, "ti": ti}


def _mlp_kernel(x_ref, wgu_ref, wd_ref, o_ref, acc_ref, *, ti):
    """One (M-tile, I-tile) step of the fused gated MLP.

    x_ref   : [tm, H]     activation tile (compute dtype, e.g. bf16)
    wgu_ref : [H, 2*ti]   packed [gate_tile | up_tile] slice (pre-transposed)
    wd_ref  : [ti, H]     down_proj slice (pre-transposed)
    o_ref   : [tm, H]     output tile (resident across the I axis)
    acc_ref : [tm, H]     f32 accumulator scratch
    """
    i = pl.program_id(1)

    x = x_ref[...]
    # One wide MXU matmul covering gate+up for this intermediate slice.
    gu = jnp.dot(x, wgu_ref[...], preferred_element_type=jnp.float32)
    g = gu[:, :ti]
    u = gu[:, ti:]
    h = _gelu_tanh(g) * u
    # Partial down projection for this intermediate slice: [tm, H] f32.
    partial = jnp.dot(h.astype(wd_ref.dtype), wd_ref[...],
                      preferred_element_type=jnp.float32)

    @pl.when(i == 0)
    def _():
        # First I-step: write directly (no zero-fill + read-modify-write).
        acc_ref[...] = partial

    @pl.when(i > 0)
    def _():
        acc_ref[...] += partial

    @pl.when(i == pl.num_programs(1) - 1)
    def _():
        o_ref[...] = acc_ref[...].astype(o_ref.dtype)


@functools.partial(jax.jit,
                   static_argnames=("tm", "ti", "vmem_limit_bytes",
                                    "compute_dtype"))
def _mlp_pallas_call(x, wgu_t, wd_t, *, tm, ti, vmem_limit_bytes,
                     compute_dtype):
    B, S, H = x.shape
    M = B * S
    M_pad = _round_up(M, tm)
    n_i = wgu_t.shape[1] // (2 * ti)

    x2 = x.reshape(M, H).astype(compute_dtype)
    if M_pad != M:
        x2 = jnp.pad(x2, ((0, M_pad - M), (0, 0)))   # padded rows sliced off

    kernel = functools.partial(_mlp_kernel, ti=ti)

    out = pl.pallas_call(
        kernel,
        out_shape=jax.ShapeDtypeStruct((M_pad, H), x.dtype),
        grid_spec=pltpu.PrefetchScalarGridSpec(
            num_scalar_prefetch=0,
            grid=(M_pad // tm, n_i),                  # reduction axis (I) last
            in_specs=[
                pl.BlockSpec((tm, H), lambda m, i: (m, 0)),        # x tile
                pl.BlockSpec((H, 2 * ti), lambda m, i: (0, i)),    # [gate|up]
                pl.BlockSpec((ti, H), lambda m, i: (i, 0)),        # down slice
            ],
            out_specs=pl.BlockSpec((tm, H), lambda m, i: (m, 0)),
            scratch_shapes=[pltpu.VMEM((tm, H), jnp.float32)],
        ),
        compiler_params=pltpu.CompilerParams(
            dimension_semantics=("parallel", "arbitrary"),
            vmem_limit_bytes=vmem_limit_bytes,
        ),
    )(x2, wgu_t, wd_t)

    return out[:M].reshape(B, S, H)


def gemma3n_text_mlp(x, packed_weights, *, tm=None,
                     compute_dtype=jnp.bfloat16):
    """Forward pass. x: [B, S, H]; packed_weights from prepare_gemma3n_mlp_weights."""
    wgu_t = packed_weights["wgu_t"]
    wd_t = packed_weights["wd_t"]
    ti = packed_weights["ti"]

    B, S, _ = x.shape
    M = B * S
    tm_default, _, vmem_limit, cores = _device_defaults()
    if tm is None:
        tm = tm_default
    # Clamp for small problems; multiple of 16 for bf16 sublane packing.
    tm = min(tm, _round_up(M, 16))
    tm = max(16, (tm // 16) * 16)
    M_pad = _round_up(M, tm)
    if cores >= 2:
        # v7x: ensure >=2 M tiles so both TensorCores get work (at small M the
        # kernel is weight-BW bound, so shrinking tm costs nothing).
        while M_pad // tm < 2 and tm > 16:
            tm = max(16, _round_up(tm // 2, 16))
            M_pad = _round_up(M, tm)

    return _mlp_pallas_call(x, wgu_t, wd_t, tm=tm, ti=ti,
                            vmem_limit_bytes=vmem_limit,
                            compute_dtype=compute_dtype)


def gemma3n_text_mlp_from_weights(x, gate_w, up_w, down_w, **kw):
    """Convenience wrapper (re-packs weights every call; prefer the 2-step API)."""
    packed = prepare_gemma3n_mlp_weights(gate_w, up_w, down_w)
    return gemma3n_text_mlp(x, packed, **kw)


def _reference(x, gate_w, up_w, down_w, compute_dtype=jnp.bfloat16):
    """Mirrors the kernel's dtype behaviour (bf16 matmuls, f32 accumulation)."""
    B, S, H = x.shape
    xc = x.reshape(-1, H).astype(compute_dtype)
    g = jnp.dot(xc, gate_w.astype(compute_dtype).T,
                preferred_element_type=jnp.float32)
    u = jnp.dot(xc, up_w.astype(compute_dtype).T,
                preferred_element_type=jnp.float32)
    h = (_gelu_tanh(g) * u).astype(compute_dtype)
    out = jnp.dot(h, down_w.astype(compute_dtype).T,
                  preferred_element_type=jnp.float32)
    return out.astype(x.dtype).reshape(B, S, H)


if __name__ == "__main__":
    # Small, MLP-consistent shapes: batch=2, seq=8, hidden=128, intermediate=256
    B, S, H, I = 2, 8, 128, 256
    key = jax.random.PRNGKey(0)
    kx, kg, ku, kd = jax.random.split(key, 4)

    x = jax.random.normal(kx, (B, S, H), dtype=jnp.float32)
    gate_w = jax.random.normal(kg, (I, H), dtype=jnp.float32) * 0.02
    up_w = jax.random.normal(ku, (I, H), dtype=jnp.float32) * 0.02
    down_w = jax.random.normal(kd, (H, I), dtype=jnp.float32) * 0.02

    # One-time weight packing (weight-load time), then the fast forward path.
    packed = prepare_gemma3n_mlp_weights(gate_w, up_w, down_w)
    out = gemma3n_text_mlp(x, packed)
    out = jax.block_until_ready(out)

    ref = _reference(x, gate_w, up_w, down_w)
    assert out.shape == (B, S, H)
    assert jnp.allclose(out, ref, atol=1e-3, rtol=1e-2), "mismatch vs reference"

    print("KERNEL_OK")
</pallas_src>

<mosaic_0001>
module attributes {stable_mosaic.version = 11 : i64} {
  func.func @_mlp_kernel(%arg0: i32, %arg1: i32, %arg2: memref<16x128xbf16, #tpu.memory_space<vmem>>, %arg3: memref<128x512xbf16, #tpu.memory_space<vmem>>, %arg4: memref<256x128xbf16, #tpu.memory_space<vmem>>, %arg5: memref<16x128xf32, #tpu.memory_space<vmem>>, %arg6: memref<16x128xf32, #tpu.memory_space<vmem>>) attributes {dimension_semantics = [#tpu.dimension_semantics<parallel>, #tpu.dimension_semantics<arbitrary>], iteration_bounds = array<i64: 1, 1>, scalar_prefetch = 0 : i64, scratch_operands = 1 : i64, tpu.core_type = #tpu.core_type<tc>, window_params = [{transform_indices = @transform_0, window_bounds = array<i64: 16, 128>}, {transform_indices = @transform_1, window_bounds = array<i64: 128, 512>}, {transform_indices = @transform_2, window_bounds = array<i64: 256, 128>}, {transform_indices = @transform_3, window_bounds = array<i64: 16, 128>}]} {
    %c0 = arith.constant 0 : index
    %c0_0 = arith.constant 0 : index
    %0 = vector.load %arg2[%c0, %c0_0] : memref<16x128xbf16, #tpu.memory_space<vmem>>, vector<16x128xbf16>
    %c0_1 = arith.constant 0 : index
    %c0_2 = arith.constant 0 : index
    %1 = vector.load %arg3[%c0_1, %c0_2] : memref<128x512xbf16, #tpu.memory_space<vmem>>, vector<128x512xbf16>
    %cst = arith.constant dense<0.000000e+00> : vector<16x512xf32>
    %2 = tpu.matmul %0, %1, %cst {dimension_numbers = #tpu.dot_dimension_numbers<[1], [0], [0], [1], [0, 0, 1, 1], [], []>} : vector<16x128xbf16>, vector<128x512xbf16>, vector<16x512xf32> -> vector<16x512xf32>
    %3 = vector.extract_strided_slice %2 {offsets = [0, 0], sizes = [16, 256], strides = [1, 1]} : vector<16x512xf32> to vector<16x256xf32>
    %4 = vector.extract_strided_slice %2 {offsets = [0, 256], sizes = [16, 256], strides = [1, 1]} : vector<16x512xf32> to vector<16x256xf32>
    %cst_3 = arith.constant 5.000000e-01 : f32
    %5 = vector.broadcast %cst_3 : f32 to vector<16x256xf32>
    %6 = arith.mulf %5, %3 : vector<16x256xf32>
    %cst_4 = arith.constant 4.471500e-02 : f32
    %7 = vector.broadcast %cst_4 : f32 to vector<16x256xf32>
    %8 = arith.mulf %7, %3 : vector<16x256xf32>
    %9 = arith.mulf %8, %3 : vector<16x256xf32>
    %10 = arith.mulf %9, %3 : vector<16x256xf32>
    %11 = arith.addf %3, %10 : vector<16x256xf32>
    %cst_5 = arith.constant 0.797884583 : f32
    %12 = vector.broadcast %cst_5 : f32 to vector<16x256xf32>
    %13 = arith.mulf %12, %11 : vector<16x256xf32>
    %14 = math.tanh %13 : vector<16x256xf32>
    %cst_6 = arith.constant 1.000000e+00 : f32
    %15 = vector.broadcast %cst_6 : f32 to vector<16x256xf32>
    %16 = arith.addf %15, %14 : vector<16x256xf32>
    %17 = arith.mulf %6, %16 : vector<16x256xf32>
    %18 = arith.mulf %17, %4 : vector<16x256xf32>
    %19 = arith.truncf %18 : vector<16x256xf32> to vector<16x256xbf16>
    %c0_7 = arith.constant 0 : index
    %c0_8 = arith.constant 0 : index
    %20 = vector.load %arg4[%c0_7, %c0_8] : memref<256x128xbf16, #tpu.memory_space<vmem>>, vector<256x128xbf16>
    %cst_9 = arith.constant dense<0.000000e+00> : vector<16x128xf32>
    %21 = tpu.matmul %19, %20, %cst_9 {dimension_numbers = #tpu.dot_dimension_numbers<[1], [0], [0], [1], [0, 0, 1, 1], [], []>} : vector<16x256xbf16>, vector<256x128xbf16>, vector<16x128xf32> -> vector<16x128xf32>
    %c0_i32 = arith.constant 0 : i32
    %22 = arith.cmpi eq, %arg1, %c0_i32 : i32
    %23 = arith.extui %22 : i1 to i32
    %c0_i32_10 = arith.constant 0 : i32
    %24 = arith.cmpi ne, %23, %c0_i32_10 : i32
    scf.if %24 {
      %c0_15 = arith.constant 0 : index
      %c0_16 = arith.constant 0 : index
      %31 = vector.load %arg6[%c0_15, %c0_16] : memref<16x128xf32, #tpu.memory_space<vmem>>, vector<16x128xf32>
      tpu.vector_store %arg6[%c0_15, %c0_16], %21 {strides = array<i32>} : memref<16x128xf32, #tpu.memory_space<vmem>>, vector<16x128xf32>,
    } else {
    }
    %c0_i32_11 = arith.constant 0 : i32
    %25 = arith.cmpi sgt, %arg1, %c0_i32_11 : i32
    %26 = arith.extui %25 : i1 to i32
    %c0_i32_12 = arith.constant 0 : i32
    %27 = arith.cmpi ne, %26, %c0_i32_12 : i32
    scf.if %27 {
      %c0_15 = arith.constant 0 : index
      %c0_16 = arith.constant 0 : index
      %31 = vector.load %arg6[%c0_15, %c0_16] : memref<16x128xf32, #tpu.memory_space<vmem>>, vector<16x128xf32>
      %32 = arith.addf %31, %21 : vector<16x128xf32>
      %c0_17 = arith.constant 0 : index
      %c0_18 = arith.constant 0 : index
      %33 = vector.load %arg6[%c0_17, %c0_18] : memref<16x128xf32, #tpu.memory_space<vmem>>, vector<16x128xf32>
      tpu.vector_store %arg6[%c0_17, %c0_18], %32 {strides = array<i32>} : memref<16x128xf32, #tpu.memory_space<vmem>>, vector<16x128xf32>,
    } else {
    }
    %c0_i32_13 = arith.constant 0 : i32
    %28 = arith.cmpi eq, %arg1, %c0_i32_13 : i32
    %29 = arith.extui %28 : i1 to i32
    %c0_i32_14 = arith.constant 0 : i32
    %30 = arith.cmpi ne, %29, %c0_i32_14 : i32
    scf.if %30 {
      %c0_15 = arith.constant 0 : index
      %c0_16 = arith.constant 0 : index
      %31 = vector.load %arg6[%c0_15, %c0_16] : memref<16x128xf32, #tpu.memory_space<vmem>>, vector<16x128xf32>
      %c0_17 = arith.constant 0 : index
      %c0_18 = arith.constant 0 : index
      %32 = vector.load %arg5[%c0_17, %c0_18] : memref<16x128xf32, #tpu.memory_space<vmem>>, vector<16x128xf32>
      tpu.vector_store %arg5[%c0_17, %c0_18], %31 {strides = array<i32>} : memref<16x128xf32, #tpu.memory_space<vmem>>, vector<16x128xf32>,
    } else {
    }
    return
  }
  func.func @transform_0(%arg0: i32, %arg1: i32) -> (i32, i32) {
    %c0_i32 = arith.constant 0 : i32
    %c0_i32_0 = arith.constant 0 : i32
    return %arg0, %c0_i32 : i32, i32
  }
  func.func @transform_1(%arg0: i32, %arg1: i32) -> (i32, i32) {
    %c0_i32 = arith.constant 0 : i32
    %c0_i32_0 = arith.constant 0 : i32
    return %c0_i32, %arg1 : i32, i32
  }
  func.func @transform_2(%arg0: i32, %arg1: i32) -> (i32, i32) {
    %c0_i32 = arith.constant 0 : i32
    %c0_i32_0 = arith.constant 0 : i32
    return %arg1, %c0_i32 : i32, i32
  }
  func.func @transform_3(%arg0: i32, %arg1: i32) -> (i32, i32) {
    %c0_i32 = arith.constant 0 : i32
    %c0_i32_0 = arith.constant 0 : i32
    return %arg0, %c0_i32 : i32, i32
  }
}

</mosaic_0001>

<llo_original>
// kernel: _mlp_pallas_call.1
$region0: #{_mlp_pallas_call.1}
  #allocation0 [shape = 'u32[]', space=smem, size = 0x4, offset = 0x4, fixed_abs, tag = 'smem constant byte address 0x4 - core index']
  #allocation1 [shape = 'u32[72,128]{1,0:T(1,128)}', space=vmem, size = 0x9000, scoped, tag = 'internal scratch']
  #allocation2 [shape = 'f32[16,128]{1,0:T(8,128)}', space=vmem, size = 0x2000, scoped, tag = 'scratch operand']
  %s0 = inlined_call_operand.vmem [shape: bf16[16,128], index: 0, kind: input, shape index: {}]
  %s1 = inlined_call_operand.hbm [shape: bf16[128,512], index: 1, kind: input, shape index: {}]
  %s2 = inlined_call_operand.hbm [shape: bf16[256,128], index: 2, kind: input, shape index: {}]
  %s3 = inlined_call_operand.hbm [shape: f32[16,128], index: 3, kind: output, shape index: {}]
  %s4 = sld [smem:[#allocation0]]
  $region42: #{_mlp_pallas_call.1} parent=0
    _
  %s6 = ssub.s32 1, %s4
  %s7 = scalar_select 0, %s6, %s4
  $region1: #{_mlp_pallas_call.1} parent=0
    #allocation3 [shape = 'u8[131072]{0}', space=vmem, size = 0x20000, scoped, tag = 'input window, operand 1, single buffered']
    #allocation4 [shape = 's32[1]{0}', space=sflag, size = 0x4, scoped, tag = 'scoped memory for _mlp_pallas_call.1']
    #allocation5 [shape = 's32[1]{0}', space=sflag, size = 0x4, scoped, tag = 'scoped memory for _mlp_pallas_call.1']
    #allocation6 [shape = 'u8[65536]{0}', space=vmem, size = 0x10000, scoped, tag = 'input window, operand 2, single buffered']
    #allocation7 [shape = 's32[1]{0}', space=sflag, size = 0x4, scoped, tag = 'scoped memory for _mlp_pallas_call.1']
    #allocation8 [shape = 'u8[8192]{0}', space=vmem, size = 0x2000, scoped, tag = 'output window, operand 0, single buffered']
    %8 = vsyncpa [#allocation4], 0
    %9 = vsyncpa [#allocation7], 0
    %10 = vsyncpa [#allocation5], 0
    // Predicated region
    $region2: #{_mlp_pallas_call.1} parent=1 // pred_check
      _
    $region3: #{_mlp_pallas_call.1} parent=1 // pred_check_branch
      %12 = sbr.rel (0) target = $region5
    $region4: #{_mlp_pallas_call.1} parent=1 // pred_region
      _
    $region5: #{_mlp_pallas_call.1} parent=1 // pred_fallthru
      _
    // Predicated region
    $region6: #{_mlp_pallas_call.1} parent=1 // pred_check
      _
    $region7: #{_mlp_pallas_call.1} parent=1 // pred_check_branch
      %14 = sbr.rel (0) target = $region9
    $region8: #{_mlp_pallas_call.1} parent=1 // pred_region
      %16 = vsyncadd [#allocation4], 0
      %s17 = sshll.u32 %s1, 4
      %s18 = int_to_ptr.hbm [resolvable:$true] %s17
      %s19 = sshll.u32 [#allocation3], 4
      %s20 = int_to_ptr.vmem [resolvable:$true] %s19
      %25 = dma.hbm_to_vmem [thread:$0]  %s18, 4096, %s20, [#allocation4], 256, 256, 16
    $region9: #{_mlp_pallas_call.1} parent=1 // pred_fallthru
      _
    // Predicated region
    $region10: #{_mlp_pallas_call.1} parent=1 // pred_check
      _
    $region11: #{_mlp_pallas_call.1} parent=1 // pred_check_branch
      %27 = sbr.rel (0) target = $region13
    $region12: #{_mlp_pallas_call.1} parent=1 // pred_region
      %29 = vsyncadd [#allocation7], 0
      %s30 = sshll.u32 %s2, 4
      %s31 = int_to_ptr.hbm [resolvable:$true] %s30
      %s32 = sshll.u32 [#allocation6], 4
      %s33 = int_to_ptr.vmem [resolvable:$true] %s32
      %38 = dma.hbm_to_vmem [thread:$0]  %s31, 2048, %s33, [#allocation7], 64, 64, 4
    $region13: #{_mlp_pallas_call.1} parent=1 // pred_fallthru
      _
    // Predicated region
    $region14: #{_mlp_pallas_call.1} parent=1 // pred_check
      _
    $region15: #{_mlp_pallas_call.1} parent=1 // pred_check_branch
      %40 = sbr.rel (0) target = $region17
    $region16: #{_mlp_pallas_call.1} parent=1 // pred_region
      %42 = dma.done [#allocation4], 4096
    $region17: #{_mlp_pallas_call.1} parent=1 // pred_fallthru
      _
    // Predicated region
    $region18: #{_mlp_pallas_call.1} parent=1 // pred_check
      _
    $region19: #{_mlp_pallas_call.1} parent=1 // pred_check_branch
      %44 = sbr.rel (0) target = $region21
    $region20: #{_mlp_pallas_call.1} parent=1 // pred_region
      %46 = dma.done [#allocation7], 2048
    $region21: #{_mlp_pallas_call.1} parent=1 // pred_fallthru
      _
    %v47 = vld [vmem:[%s0] sm:$0xf]
    %v48 = vld [vmem:[%s0 + $0x4] sm:$0xf]
    %v49 = vld [vmem:[#allocation3] sm:$0xff]
    %v50 = vld [vmem:[#allocation3 + $0x8] sm:$0xff]
    %v51 = vld [vmem:[#allocation3 + $0x10] sm:$0xff]
    %v52 = vld [vmem:[#allocation3 + $0x18] sm:$0xff]
    %v53 = vld [vmem:[#allocation3 + $0x20] sm:$0xff]
    %v54 = vld [vmem:[#allocation3 + $0x28] sm:$0xff]
    %v55 = vld [vmem:[#allocation3 + $0x30] sm:$0xff]
    %v56 = vld [vmem:[#allocation3 + $0x38] sm:$0xff]
    %v57 = vld [vmem:[#allocation3 + $0x40] sm:$0xff]
    %v58 = vld [vmem:[#allocation3 + $0x48] sm:$0xff]
    %v59 = vld [vmem:[#allocation3 + $0x50] sm:$0xff]
    %v60 = vld [vmem:[#allocation3 + $0x58] sm:$0xff]
    %v61 = vld [vmem:[#allocation3 + $0x60] sm:$0xff]
    %v62 = vld [vmem:[#allocation3 + $0x68] sm:$0xff]
    %v63 = vld [vmem:[#allocation3 + $0x70] sm:$0xff]
    %v64 = vld [vmem:[#allocation3 + $0x78] sm:$0xff]
    %v65 = vld [vmem:[#allocation3 + $0x80] sm:$0xff]
    %v66 = vld [vmem:[#allocation3 + $0x88] sm:$0xff]
    %v67 = vld [vmem:[#allocation3 + $0x90] sm:$0xff]
    %v68 = vld [vmem:[#allocation3 + $0x98] sm:$0xff]
    %v69 = vld [vmem:[#allocation3 + $0xa0] sm:$0xff]
    %v70 = vld [vmem:[#allocation3 + $0xa8] sm:$0xff]
    %v71 = vld [vmem:[#allocation3 + $0xb0] sm:$0xff]
    %v72 = vld [vmem:[#allocation3 + $0xb8] sm:$0xff]
    %v73 = vld [vmem:[#allocation3 + $0xc0] sm:$0xff]
    %v74 = vld [vmem:[#allocation3 + $0xc8] sm:$0xff]
    %v75 = vld [vmem:[#allocation3 + $0xd0] sm:$0xff]
    %v76 = vld [vmem:[#allocation3 + $0xd8] sm:$0xff]
    %v77 = vld [vmem:[#allocation3 + $0xe0] sm:$0xff]
    %v78 = vld [vmem:[#allocation3 + $0xe8] sm:$0xff]
    %v79 = vld [vmem:[#allocation3 + $0xf0] sm:$0xff]
    %v80 = vld [vmem:[#allocation3 + $0xf8] sm:$0xff]
    %v83 = vunpack.c.l.b16 %v47
    %v84 = vunpack.c.l.b16 %v48
    %v85 = vpack.c.b16 %v84, %v83
    %v119 = vunpack.c.l.b16 %v49
    %v120 = vunpack.c.h.b16 %v49
    %v121 = vunpack.c.l.b16 %v50
    %v122 = vunpack.c.h.b16 %v50
    %v123 = vunpack.c.l.b16 %v51
    %v124 = vunpack.c.h.b16 %v51
    %v125 = vunpack.c.l.b16 %v52
    %v126 = vunpack.c.h.b16 %v52
    %v127 = vunpack.c.l.b16 %v53
    %v128 = vunpack.c.h.b16 %v53
    %v129 = vunpack.c.l.b16 %v54
    %v130 = vunpack.c.h.b16 %v54
    %v131 = vunpack.c.l.b16 %v55
    %v132 = vunpack.c.h.b16 %v55
    %v133 = vunpack.c.l.b16 %v56
    %v134 = vunpack.c.h.b16 %v56
    %v135 = vunpack.c.l.b16 %v57
    %v136 = vunpack.c.h.b16 %v57
    %v137 = vunpack.c.l.b16 %v58
    %v138 = vunpack.c.h.b16 %v58
    %v139 = vunpack.c.l.b16 %v59
    %v140 = vunpack.c.h.b16 %v59
    %v141 = vunpack.c.l.b16 %v60
    %v142 = vunpack.c.h.b16 %v60
    %v143 = vunpack.c.l.b16 %v61
    %v144 = vunpack.c.h.b16 %v61
    %v145 = vunpack.c.l.b16 %v62
    %v146 = vunpack.c.h.b16 %v62
    %v147 = vunpack.c.l.b16 %v63
    %v148 = vunpack.c.h.b16 %v63
    %v149 = vunpack.c.l.b16 %v64
    %v150 = vunpack.c.h.b16 %v64
    %v151 = vunpack.c.l.b16 %v65
    %v152 = vunpack.c.h.b16 %v65
    %v153 = vunpack.c.l.b16 %v66
    %v154 = vunpack.c.h.b16 %v66
    %v155 = vunpack.c.l.b16 %v67
    %v156 = vunpack.c.h.b16 %v67
    %v157 = vunpack.c.l.b16 %v68
    %v158 = vunpack.c.h.b16 %v68
    %v159 = vunpack.c.l.b16 %v69
    %v160 = vunpack.c.h.b16 %v69
    %v161 = vunpack.c.l.b16 %v70
    %v162 = vunpack.c.h.b16 %v70
    %v163 = vunpack.c.l.b16 %v71
    %v164 = vunpack.c.h.b16 %v71
    %v165 = vunpack.c.l.b16 %v72
    %v166 = vunpack.c.h.b16 %v72
    %v167 = vunpack.c.l.b16 %v73
    %v168 = vunpack.c.h.b16 %v73
    %v169 = vunpack.c.l.b16 %v74
    %v170 = vunpack.c.h.b16 %v74
    %v171 = vunpack.c.l.b16 %v75
    %v172 = vunpack.c.h.b16 %v75
    %v173 = vunpack.c.l.b16 %v76
    %v174 = vunpack.c.h.b16 %v76
    %v175 = vunpack.c.l.b16 %v77
    %v176 = vunpack.c.h.b16 %v77
    %v177 = vunpack.c.l.b16 %v78
    %v178 = vunpack.c.h.b16 %v78
    %v179 = vunpack.c.l.b16 %v79
    %v180 = vunpack.c.h.b16 %v79
    %v181 = vunpack.c.l.b16 %v80
    %v182 = vunpack.c.h.b16 %v80
    %v183 = vpack.c.b16 %v123, %v119
    %v184 = vpack.c.b16 %v124, %v120
    %v185 = vpack.c.b16 %v125, %v121
    %v186 = vpack.c.b16 %v126, %v122
    %v187 = vpack.c.b16 %v131, %v127
    %v188 = vpack.c.b16 %v132, %v128
    %v189 = vpack.c.b16 %v133, %v129
    %v190 = vpack.c.b16 %v134, %v130
    %v191 = vpack.c.b16 %v139, %v135
    %v192 = vpack.c.b16 %v140, %v136
    %v193 = vpack.c.b16 %v141, %v137
    %v194 = vpack.c.b16 %v142, %v138
    %v195 = vpack.c.b16 %v147, %v143
    %v196 = vpack.c.b16 %v148, %v144
    %v197 = vpack.c.b16 %v149, %v145
    %v198 = vpack.c.b16 %v150, %v146
    %v199 = vpack.c.b16 %v155, %v151
    %v200 = vpack.c.b16 %v156, %v152
    %v201 = vpack.c.b16 %v157, %v153
    %v202 = vpack.c.b16 %v158, %v154
    %v203 = vpack.c.b16 %v163, %v159
    %v204 = vpack.c.b16 %v164, %v160
    %v205 = vpack.c.b16 %v165, %v161
    %v206 = vpack.c.b16 %v166, %v162
    %v207 = vpack.c.b16 %v171, %v167
    %v208 = vpack.c.b16 %v172, %v168
    %v209 = vpack.c.b16 %v173, %v169
    %v210 = vpack.c.b16 %v174, %v170
    %v211 = vpack.c.b16 %v179, %v175
    %v212 = vpack.c.b16 %v180, %v176
    %v213 = vpack.c.b16 %v181, %v177
    %v214 = vpack.c.b16 %v182, %v178
    %247 = vmatpush.bf16.msra.mxu0 %v211
    %248 = vmatpush.bf16.msra.mxu0 %v207
    %249 = vmatpush.bf16.msra.mxu0 %v203
    %250 = vmatpush.bf16.msra.mxu0 %v199
    %251 = vmatpush.bf16.msra.mxu0 %v195
    %252 = vmatpush.bf16.msra.mxu0 %v191
    %253 = vmatpush.bf16.msra.mxu0 %v187
    %254 = vmatpush.bf16.msra.mxu0 %v183
    %255 = vmatmul.bf16.gmra.mxu0 %v85
    %v256 = vpop.f32.mrf.mxu0
    %v257 = vadd.f32 0.0, %v256
    %v258 = vpop.f32.mrf.mxu0
    %v259 = vadd.f32 0.0, %v258
    %260 = vdwg.mxu0
    %261 = vmatpush.bf16.msra.mxu0 %v212
    %262 = vmatpush.bf16.msra.mxu0 %v208
    %263 = vmatpush.bf16.msra.mxu0 %v204
    %264 = vmatpush.bf16.msra.mxu0 %v200
    %265 = vmatpush.bf16.msra.mxu0 %v196
    %266 = vmatpush.bf16.msra.mxu0 %v192
    %267 = vmatpush.bf16.msra.mxu0 %v188
    %268 = vmatpush.bf16.msra.mxu0 %v184
    %269 = vmatmul.bf16.gmra.mxu0 %v85
    %v270 = vpop.f32.mrf.mxu0
    %v271 = vadd.f32 0.0, %v270
    %v272 = vpop.f32.mrf.mxu0
    %v273 = vadd.f32 0.0, %v272
    %274 = vdwg.mxu0
    %275 = vmatpush.bf16.msra.mxu0 %v213
    %276 = vmatpush.bf16.msra.mxu0 %v209
    %277 = vmatpush.bf16.msra.mxu0 %v205
    %278 = vmatpush.bf16.msra.mxu0 %v201
    %279 = vmatpush.bf16.msra.mxu0 %v197
    %280 = vmatpush.bf16.msra.mxu0 %v193
    %281 = vmatpush.bf16.msra.mxu0 %v189
    %282 = vmatpush.bf16.msra.mxu0 %v185
    %283 = vmatmul.bf16.gmra.mxu0 %v85
    %v284 = vpop.f32.mrf.mxu0
    %v285 = vadd.f32 0.0, %v284
    %v286 = vpop.f32.mrf.mxu0
    %v287 = vadd.f32 0.0, %v286
    %288 = vdwg.mxu0
    %289 = vmatpush.bf16.msra.mxu0 %v214
    %290 = vmatpush.bf16.msra.mxu0 %v210
    %291 = vmatpush.bf16.msra.mxu0 %v206
    %292 = vmatpush.bf16.msra.mxu0 %v202
    %293 = vmatpush.bf16.msra.mxu0 %v198
    %294 = vmatpush.bf16.msra.mxu0 %v194
    %295 = vmatpush.bf16.msra.mxu0 %v190
    %296 = vmatpush.bf16.msra.mxu0 %v186
    %297 = vmatmul.bf16.gmra.mxu0 %v85
    %v298 = vpop.f32.mrf.mxu0
    %v299 = vadd.f32 0.0, %v298
    %v300 = vpop.f32.mrf.mxu0
    %v301 = vadd.f32 0.0, %v300
    %302 = vdwg.mxu0
    %v303 = vmul.f32 %v257, 0.5
    %v304 = vmul.f32 %v271, 0.5
    %v305 = vmul.f32 %v259, 0.5
    %v306 = vmul.f32 %v273, 0.5
    %v307 = vmul.f32 %v257, 0.044715
    %v308 = vmul.f32 %v271, 0.044715
    %v309 = vmul.f32 %v259, 0.044715
    %v310 = vmul.f32 %v273, 0.044715
    %v311 = vmul.f32 %v307, %v257
    %v312 = vmul.f32 %v308, %v271
    %v313 = vmul.f32 %v309, %v259
    %v314 = vmul.f32 %v310, %v273
    %v315 = vmul.f32 %v311, %v257
    %v316 = vmul.f32 %v312, %v271
    %v317 = vmul.f32 %v313, %v259
    %v318 = vmul.f32 %v314, %v273
    %v319 = vadd.f32 %v257, %v315
    %v320 = vadd.f32 %v271, %v316
    %v321 = vadd.f32 %v259, %v317
    %v322 = vadd.f32 %v273, %v318
    %v323 = vmul.f32 %v319, 0.7978846
    %v324 = vmul.f32 %v320, 0.7978846
    %v325 = vmul.f32 %v321, 0.7978846
    %v326 = vmul.f32 %v322, 0.7978846
    %v327 = vtanh.pop %v323
    %v328 = vtanh.pop %v324
    %v329 = vtanh.pop %v325
    %v330 = vtanh.pop %v326
    %v331 = vadd.f32 %v327, 1.0
    %v332 = vadd.f32 %v328, 1.0
    %v333 = vadd.f32 %v329, 1.0
    %v334 = vadd.f32 %v330, 1.0
    %v335 = vmul.f32 %v303, %v331
    %v336 = vmul.f32 %v304, %v332
    %v337 = vmul.f32 %v305, %v333
    %v338 = vmul.f32 %v306, %v334
    %v339 = vmul.f32 %v335, %v285
    %v340 = vmul.f32 %v336, %v299
    %v341 = vmul.f32 %v337, %v287
    %v342 = vmul.f32 %v338, %v301
    %v343 = vpack.c.bf16 %v341, %v339
    %v344 = vpack.c.bf16 %v342, %v340
    %v345 = vld [vmem:[#allocation6] sm:$0xf]
    %v346 = vld [vmem:[#allocation6 + $0x4] sm:$0xf]
    %v347 = vld [vmem:[#allocation6 + $0x8] sm:$0xf]
    %v348 = vld [vmem:[#allocation6 + $0xc] sm:$0xf]
    %v349 = vld [vmem:[#allocation6 + $0x10] sm:$0xf]
    %v350 = vld [vmem:[#allocation6 + $0x14] sm:$0xf]
    %v351 = vld [vmem:[#allocation6 + $0x18] sm:$0xf]
    %v352 = vld [vmem:[#allocation6 + $0x1c] sm:$0xf]
    %v353 = vld [vmem:[#allocation6 + $0x20] sm:$0xf]
    %v354 = vld [vmem:[#allocation6 + $0x24] sm:$0xf]
    %v355 = vld [vmem:[#allocation6 + $0x28] sm:$0xf]
    %v356 = vld [vmem:[#allocation6 + $0x2c] sm:$0xf]
    %v357 = vld [vmem:[#allocation6 + $0x30] sm:$0xf]
    %v358 = vld [vmem:[#allocation6 + $0x34] sm:$0xf]
    %v359 = vld [vmem:[#allocation6 + $0x38] sm:$0xf]
    %v360 = vld [vmem:[#allocation6 + $0x3c] sm:$0xf]
    %v361 = vld [vmem:[#allocation6 + $0x40] sm:$0xf]
    %v362 = vld [vmem:[#allocation6 + $0x44] sm:$0xf]
    %v363 = vld [vmem:[#allocation6 + $0x48] sm:$0xf]
    %v364 = vld [vmem:[#allocation6 + $0x4c] sm:$0xf]
    %v365 = vld [vmem:[#allocation6 + $0x50] sm:$0xf]
    %v366 = vld [vmem:[#allocation6 + $0x54] sm:$0xf]
    %v367 = vld [vmem:[#allocation6 + $0x58] sm:$0xf]
    %v368 = vld [vmem:[#allocation6 + $0x5c] sm:$0xf]
    %v369 = vld [vmem:[#allocation6 + $0x60] sm:$0xf]
    %v370 = vld [vmem:[#allocation6 + $0x64] sm:$0xf]
    %v371 = vld [vmem:[#allocation6 + $0x68] sm:$0xf]
    %v372 = vld [vmem:[#allocation6 + $0x6c] sm:$0xf]
    %v373 = vld [vmem:[#allocation6 + $0x70] sm:$0xf]
    %v374 = vld [vmem:[#allocation6 + $0x74] sm:$0xf]
    %v375 = vld [vmem:[#allocation6 + $0x78] sm:$0xf]
    %v376 = vld [vmem:[#allocation6 + $0x7c] sm:$0xf]
    %v409 = vunpack.c.l.b16 %v345
    %v410 = vunpack.c.l.b16 %v346
    %v411 = vunpack.c.l.b16 %v347
    %v412 = vunpack.c.l.b16 %v348
    %v413 = vunpack.c.l.b16 %v349
    %v414 = vunpack.c.l.b16 %v350
    %v415 = vunpack.c.l.b16 %v351
    %v416 = vunpack.c.l.b16 %v352
    %v417 = vunpack.c.l.b16 %v353
    %v418 = vunpack.c.l.b16 %v354
    %v419 = vunpack.c.l.b16 %v355
    %v420 = vunpack.c.l.b16 %v356
    %v421 = vunpack.c.l.b16 %v357
    %v422 = vunpack.c.l.b16 %v358
    %v423 = vunpack.c.l.b16 %v359
    %v424 = vunpack.c.l.b16 %v360
    %v425 = vunpack.c.l.b16 %v361
    %v426 = vunpack.c.l.b16 %v362
    %v427 = vunpack.c.l.b16 %v363
    %v428 = vunpack.c.l.b16 %v364
    %v429 = vunpack.c.l.b16 %v365
    %v430 = vunpack.c.l.b16 %v366
    %v431 = vunpack.c.l.b16 %v367
    %v432 = vunpack.c.l.b16 %v368
    %v433 = vunpack.c.l.b16 %v369
    %v434 = vunpack.c.l.b16 %v370
    %v435 = vunpack.c.l.b16 %v371
    %v436 = vunpack.c.l.b16 %v372
    %v437 = vunpack.c.l.b16 %v373
    %v438 = vunpack.c.l.b16 %v374
    %v439 = vunpack.c.l.b16 %v375
    %v440 = vunpack.c.l.b16 %v376
    %v441 = vpack.c.b16 %v410, %v409
    %v442 = vpack.c.b16 %v412, %v411
    %v443 = vpack.c.b16 %v414, %v413
    %v444 = vpack.c.b16 %v416, %v415
    %v445 = vpack.c.b16 %v418, %v417
    %v446 = vpack.c.b16 %v420, %v419
    %v447 = vpack.c.b16 %v422, %v421
    %v448 = vpack.c.b16 %v424, %v423
    %v449 = vpack.c.b16 %v426, %v425
    %v450 = vpack.c.b16 %v428, %v427
    %v451 = vpack.c.b16 %v430, %v429
    %v452 = vpack.c.b16 %v432, %v431
    %v453 = vpack.c.b16 %v434, %v433
    %v454 = vpack.c.b16 %v436, %v435
    %v455 = vpack.c.b16 %v438, %v437
    %v456 = vpack.c.b16 %v440, %v439
    %473 = vmatpush.bf16.msra.mxu0 %v448
    %474 = vmatpush.bf16.msra.mxu0 %v447
    %475 = vmatpush.bf16.msra.mxu0 %v446
    %476 = vmatpush.bf16.msra.mxu0 %v445
    %477 = vmatpush.bf16.msra.mxu0 %v444
    %478 = vmatpush.bf16.msra.mxu0 %v443
    %479 = vmatpush.bf16.msra.mxu0 %v442
    %480 = vmatpush.bf16.msra.mxu0 %v441
    %481 = vmatmul.bf16.gmra.mxu0 %v343
    %v482 = vpop.f32.mrf.mxu0
    %v483 = vadd.f32 0.0, %v482
    %v484 = vpop.f32.mrf.mxu0
    %v485 = vadd.f32 0.0, %v484
    %486 = vdwg.mxu0
    %487 = vmatpush.bf16.msra.mxu0 %v456
    %488 = vmatpush.bf16.msra.mxu0 %v455
    %489 = vmatpush.bf16.msra.mxu0 %v454
    %490 = vmatpush.bf16.msra.mxu0 %v453
    %491 = vmatpush.bf16.msra.mxu0 %v452
    %492 = vmatpush.bf16.msra.mxu0 %v451
    %493 = vmatpush.bf16.msra.mxu0 %v450
    %494 = vmatpush.bf16.msra.mxu0 %v449
    %495 = vmatmul.bf16.gmra.mxu0 %v344
    %v496 = vpop.f32.mrf.mxu0
    %v497 = vadd.f32 %v483, %v496
    %v498 = vpop.f32.mrf.mxu0
    %v499 = vadd.f32 %v485, %v498
    %500 = vdwg.mxu0
    %p501 = scmp.eq.s32.totalorder 0, 0
    // Predicated region
    $region22: #{_mlp_pallas_call.1} parent=1 // pred_check
      %p502 = pneg %p501
    $region23: #{_mlp_pallas_call.1} parent=1 // pred_check_branch
      %504 = sbr.rel (%p502) target = $region25
    $region24: #{_mlp_pallas_call.1} parent=1 // pred_region
      %505 = vst [vmem:[#allocation2] sm:$0xff] %v497
      %506 = vst [vmem:[#allocation2 + $0x8] sm:$0xff] %v499
    $region25: #{_mlp_pallas_call.1} parent=1 // pred_fallthru
      _
    %p507 = scmp.gt.s32.totalorder 0, 0
    // Predicated region
    $region26: #{_mlp_pallas_call.1} parent=1 // pred_check
      %p508 = pneg %p507
    $region27: #{_mlp_pallas_call.1} parent=1 // pred_check_branch
      %510 = sbr.rel (%p508) target = $region29
    $region28: #{_mlp_pallas_call.1} parent=1 // pred_region
      %v511 = vld [vmem:[#allocation2] sm:$0xff]
      %v512 = vld [vmem:[#allocation2 + $0x8] sm:$0xff]
      %v513 = vadd.f32 %v511, %v497
      %v514 = vadd.f32 %v512, %v499
      %515 = vst [vmem:[#allocation2] sm:$0xff] %v513
      %516 = vst [vmem:[#allocation2 + $0x8] sm:$0xff] %v514
    $region29: #{_mlp_pallas_call.1} parent=1 // pred_fallthru
      _
    // Predicated region
    $region30: #{_mlp_pallas_call.1} parent=1 // pred_check
      %p517 = pneg %p501
    $region31: #{_mlp_pallas_call.1} parent=1 // pred_check_branch
      %519 = sbr.rel (%p517) target = $region33
    $region32: #{_mlp_pallas_call.1} parent=1 // pred_region
      %v520 = vld [vmem:[#allocation2] sm:$0xff]
      %v521 = vld [vmem:[#allocation2 + $0x8] sm:$0xff]
      %522 = vst [vmem:[#allocation8] sm:$0xff] %v520
      %523 = vst [vmem:[#allocation8 + $0x8] sm:$0xff] %v521
    $region33: #{_mlp_pallas_call.1} parent=1 // pred_fallthru
      _
    // Predicated region
    $region34: #{_mlp_pallas_call.1} parent=1 // pred_check
      _
    $region35: #{_mlp_pallas_call.1} parent=1 // pred_check_branch
      %525 = sbr.rel (0) target = $region37
    $region36: #{_mlp_pallas_call.1} parent=1 // pred_region
      %527 = vsyncadd [#allocation5], 0
      %s528 = sshll.u32 [#allocation8], 4
      %s529 = int_to_ptr.vmem [resolvable:$true] %s528
      %s530 = sshll.u32 %s3, 4
      %s531 = int_to_ptr.hbm [resolvable:$true] %s530
      %536 = dma.vmem_to_hbm [thread:$0]  %s529, 256, %s531, [#allocation5], 128, 128, 8
    $region37: #{_mlp_pallas_call.1} parent=1 // pred_fallthru
      _
    // Predicated region
    $region38: #{_mlp_pallas_call.1} parent=1 // pred_check
      _
    $region39: #{_mlp_pallas_call.1} parent=1 // pred_check_branch
      %538 = sbr.rel (0) target = $region41
    $region40: #{_mlp_pallas_call.1} parent=1 // pred_region
      %540 = dma.done [#allocation5], 256
    $region41: #{_mlp_pallas_call.1} parent=1 // pred_fallthru
      _
    %541 = vsyncpa [#allocation4], 1
    %542 = vsyncpa [#allocation7], 1
    %543 = vsyncpa [#allocation5], 1

</llo_original>
